<compile_context>
chip_gen: v5e
topology: v5e:2x2
jax: 0.10.0
libtpu: 0.0.40
codegen_flags: <defaults>
</compile_context>

<pallas_src>
import jax
import jax.numpy as jnp
from jax.experimental import pallas as pl
from jax.experimental.pallas import tpu as pltpu

WIDTH = 512             # lane-dense slab width (multiple of the 128-lane vreg)
SINGLE_MAX_ROWS = 2048  # <= (2048, 512) f32 = 4 MiB -> single grid-less block
BLOCK_ROWS = 2048       # stage-1 block: (2048, 512) f32 = 4 MiB per buffer


def _all_single_kernel(x_ref, o_ref):
    """Whole (rows, WIDTH) slab -> (1, 1) int32 scalar (1 iff all non-zero)."""
    ok = jnp.all(x_ref[...] != 0)
    o_ref[...] = jnp.where(ok, jnp.ones_like(o_ref), jnp.zeros_like(o_ref))


def _all_partial_kernel(x_ref, o_ref):
    """Fold one (BLOCK_ROWS, WIDTH) block to an aligned (8, WIDTH) int32 partial.

    Pure VPU work (compare + elementwise min-fold across groups of vreg rows);
    no per-block cross-lane reduce, no masked sub-tile stores.  The reshape is
    a major-dim split that keeps the last two dims (8, WIDTH) tile-aligned.
    """
    r, w = x_ref.shape
    m = (x_ref[...] != 0).astype(jnp.int32)                 # VPU compare/select
    o_ref[...] = jnp.min(m.reshape(r // 8, 8, w), axis=0)   # elementwise AND-fold


def _reduce_all_2d(x2d):
    rows, width = x2d.shape

    if rows <= SINGLE_MAX_ROWS:
        # Single block, no grid: one DMA in, one reduce, one scalar write.
        out = pl.pallas_call(
            _all_single_kernel,
            out_shape=jax.ShapeDtypeStruct((1, 1), jnp.int32),
        )(x2d)
        return out[0, 0].astype(jnp.bool_)

    # Stage 1: parallel tiled partial reduction over big lane-dense blocks.
    pad_rows = (-rows) % BLOCK_ROWS
    if pad_rows:  # cold path: only when the row count is ragged
        x2d = jnp.concatenate(
            [x2d, jnp.ones((pad_rows, width), x2d.dtype)], axis=0)
    num_blocks = x2d.shape[0] // BLOCK_ROWS

    partials = pl.pallas_call(
        _all_partial_kernel,
        out_shape=jax.ShapeDtypeStruct((num_blocks * 8, width), jnp.int32),
        grid=(num_blocks,),
        in_specs=[pl.BlockSpec((BLOCK_ROWS, width), lambda i: (i, 0))],
        out_specs=pl.BlockSpec((8, width), lambda i: (i, 0)),
        compiler_params=pltpu.CompilerParams(
            # independent blocks -> both v7x TensorCores stream halves
            dimension_semantics=("parallel",),
            # 8 MiB double-buffered input + tiny outputs; explicit cap keeps
            # the same tiling safe on v5e's smaller scoped default and within
            # v7x's 64 MiB physical VMEM.
            vmem_limit_bytes=32 * 1024 * 1024,
        ),
    )(x2d)

    # Stage 2: fold the (num_blocks*8, WIDTH) partials; recursion bottoms out
    # in the grid-less single-block kernel above.
    return _reduce_all_2d(partials)


def pallas_all(x):
    """Equivalent of torch.all(x): scalar bool, True iff every element is non-zero."""
    flat = x.reshape(-1)
    n = flat.shape[0]
    pad = (-n) % WIDTH
    if pad:  # cold path: identity (non-zero) padding only when the size is ragged
        flat = jnp.concatenate([flat, jnp.ones((pad,), flat.dtype)])
    x2d = flat.reshape(-1, WIDTH)
    return _reduce_all_2d(x2d)


if __name__ == "__main__":
    key = jax.random.PRNGKey(0)

    # NCHW-like small input consistent with the test module.
    x = jax.random.normal(key, (2, 4, 16, 16), dtype=jnp.float32)
    result = pallas_all(x)
    jax.block_until_ready(result)
    assert bool(result) == bool(jnp.all(x != 0)), (bool(result),)

    # case containing a zero -> expect False
    x_zero = x.at[1, 2, 3, 4].set(0.0)
    result_zero = pallas_all(x_zero)
    jax.block_until_ready(result_zero)
    assert bool(result_zero) == bool(jnp.all(x_zero != 0))

    # exercise the tiled two-stage ('parallel') path on a larger input
    xl = jax.random.normal(jax.random.PRNGKey(1), (8, 8, 128, 128), dtype=jnp.float32)
    rl = pallas_all(xl)
    jax.block_until_ready(rl)
    assert bool(rl) == bool(jnp.all(xl != 0))

    xl_zero = xl.at[3, 5, 7, 11].set(0.0)
    rl_zero = pallas_all(xl_zero)
    jax.block_until_ready(rl_zero)
    assert bool(rl_zero) == bool(jnp.all(xl_zero != 0))

    print("KERNEL_OK")
</pallas_src>

<mosaic_0001>
module attributes {stable_mosaic.version = 11 : i64} {
  func.func @_all_single_kernel(%arg0: memref<4x512xf32, #tpu.memory_space<vmem>>, %arg1: memref<1x1xi32, #tpu.memory_space<vmem>>) attributes {dimension_semantics = [], scalar_prefetch = 0 : i64, scratch_operands = 0 : i64, tpu.core_type = #tpu.core_type<tc>} {
    %c0 = arith.constant 0 : index
    %c0_0 = arith.constant 0 : index
    %0 = vector.load %arg0[%c0, %c0_0] : memref<4x512xf32, #tpu.memory_space<vmem>>, vector<4x512xf32>
    %cst = arith.constant 0.000000e+00 : f32
    %1 = vector.broadcast %cst : f32 to vector<4x512xf32>
    %2 = arith.cmpf one, %0, %1 : vector<4x512xf32>
    %cst_1 = arith.constant 1.000000e+00 : f32
    %cst_2 = arith.constant 0.000000e+00 : f32
    %3 = vector.broadcast %cst_1 : f32 to vector<4x512xf32>
    %4 = vector.broadcast %cst_2 : f32 to vector<4x512xf32>
    %5 = arith.select %2, %3, %4 : vector<4x512xi1>, vector<4x512xf32>
    %6 = vector.shape_cast %5 : vector<4x512xf32> to vector<1x4x512xf32>
    %cst_3 = arith.constant dense<0x7F800000> : vector<1xf32>
    %7 = vector.multi_reduction <minimumf>, %6, %cst_3 [1, 2] : vector<1x4x512xf32> to vector<1xf32>
    %8 = vector.shape_cast %7 : vector<1xf32> to vector<1x1x1xf32>
    %9 = vector.extract %8[0, 0, 0] : f32 from vector<1x1x1xf32>
    %cst_4 = arith.constant 0.000000e+00 : f32
    %10 = arith.cmpf ogt, %9, %cst_4 : f32
    %c1_i32 = arith.constant 1 : i32
    %11 = vector.broadcast %c1_i32 : i32 to vector<1x1xi32>
    %c0_i32 = arith.constant 0 : i32
    %12 = vector.broadcast %c0_i32 : i32 to vector<1x1xi32>
    %13 = arith.select %10, %11, %12 : vector<1x1xi32>
    %c0_5 = arith.constant 0 : index
    %c0_6 = arith.constant 0 : index
    %14 = vector.load %arg1[%c0_5, %c0_6] : memref<1x1xi32, #tpu.memory_space<vmem>>, vector<1x1xi32>
    tpu.vector_store %arg1[%c0_5, %c0_6], %13 {strides = array<i32>} : memref<1x1xi32, #tpu.memory_space<vmem>>, vector<1x1xi32>,
    return
  }
}

</mosaic_0001>

<llo_original>
// kernel: tpu_custom_call.1
$region0: #{tpu_custom_call.1}
  #allocation0 [shape = 'u32[]', space=smem, size = 0x4, offset = 0x4, fixed_abs, tag = 'smem constant byte address 0x4 - core index']
  #allocation1 [shape = 'u32[72,128]{1,0:T(1,128)}', space=vmem, size = 0x9000, scoped, tag = 'internal scratch']
  %s0 = inlined_call_operand.hbm [shape: f32[4,512], index: 0, kind: input, shape index: {}]
  %s1 = inlined_call_operand.hbm [shape: s32[1,1], index: 1, kind: output, shape index: {}]
  %s2 = sld [smem:[#allocation0]]
  $region18: #{tpu_custom_call.1} parent=0
    _
  %s4 = ssub.s32 1, %s2
  %s5 = scalar_select 0, %s4, %s2
  $region1: #{tpu_custom_call.1} parent=0
    #allocation2 [shape = 'u8[8192]{0}', space=vmem, size = 0x2000, scoped, tag = 'input window, operand 0, single buffered']
    #allocation3 [shape = 's32[1]{0}', space=sflag, size = 0x4, scoped, tag = 'scoped memory for tpu_custom_call.1']
    #allocation4 [shape = 's32[1]{0}', space=sflag, size = 0x4, scoped, tag = 'scoped memory for tpu_custom_call.1']
    #allocation5 [shape = 'u8[512]{0}', space=vmem, size = 0x400, scoped, tag = 'output window, operand 0, single buffered']
    %6 = vsyncpa [#allocation3], 0
    %7 = vsyncpa [#allocation4], 0
    // Predicated region
    $region2: #{tpu_custom_call.1} parent=1 // pred_check
      _
    $region3: #{tpu_custom_call.1} parent=1 // pred_check_branch
      %9 = sbr.rel (0) target = $region5
    $region4: #{tpu_custom_call.1} parent=1 // pred_region
      %11 = vsyncadd [#allocation3], 0
      %s13 = sshll.u32 %s0, 4
      %s14 = int_to_ptr.hbm [resolvable:$true] %s13
      %s15 = sshll.u32 [#allocation2], 4
      %s16 = int_to_ptr.vmem [resolvable:$true] %s15
      %18 = dma.hbm_to_vmem [thread:$0]  %s14, 256, %s16, [#allocation3]
    $region5: #{tpu_custom_call.1} parent=1 // pred_fallthru
      _
    // Predicated region
    $region6: #{tpu_custom_call.1} parent=1 // pred_check
      _
    $region7: #{tpu_custom_call.1} parent=1 // pred_check_branch
      %20 = sbr.rel (0) target = $region9
    $region8: #{tpu_custom_call.1} parent=1 // pred_region
      %22 = dma.done [#allocation3], 256
    $region9: #{tpu_custom_call.1} parent=1 // pred_fallthru
      _
    %v23 = vld [vmem:[#allocation2] sm:$0xff]
    %v24 = vld [vmem:[#allocation2 + $0x8] sm:$0xff]
    %vm25 = vcmp.ne.f32.partialorder %v23, 0.0
    %vm26 = vcmp.ne.f32.partialorder %v24, 0.0
    %v27 = vsel %vm25, 1.0, 0.0
    %v28 = vsel %vm26, 1.0, 0.0
    %31 = vst [vmem:[#allocation1] ss:$2 sm:$0xff] %v27
    %s32 = scalar_lea.vmem [#allocation1], 16
    %33 = vst [vmem:[%s32] ss:$2 sm:$0xff] %v28
    %v34 = vld.sshfl [vmem:[#allocation1] sm:$0xff pattern:$0x75316420]
    %v35 = vld.sshfl [vmem:[#allocation1 + $0x8] sm:$0xff pattern:$0x75316420]
    %v36 = vld.sshfl [vmem:[#allocation1 + $0x10] sm:$0xff pattern:$0x75316420]
    %v37 = vld.sshfl [vmem:[#allocation1 + $0x18] sm:$0xff pattern:$0x75316420]
    %vm42 = vcmask 1043456
    %v43 = vsel %vm42, %v34, inf
    %v44 = vsel %vm42, %v35, inf
    %v45 = vsel %vm42, %v36, inf
    %v46 = vsel %vm42, %v37, inf
    %v47 = vmin.f32 %v43, %v44
    %v48 = vmin.f32 %v45, %v46
    %v49 = vmin.f32 %v47, %v48
    %50 = vmin.xlane.f32.xlu0 %v49
    %v51 = vpop.xlane.xlu0 %50
    %v52 = vrot.slane %v51, 4
    %v53 = vmin.f32 %v51, %v52
    %v54 = vrot.slane %v53, 2
    %v55 = vmin.f32 %v53, %v54
    %v56 = vrot.slane %v55, 1
    %v57 = vmin.f32 %v55, %v56
    %s58 = vtos %v57
    %p59 = scmp.gt.f32.partialorder %s58, 0.0
    %s60 = scalar_select %p59, 1, 0
    %v61 = vstv %s60
    %vm62 = vcmp.eq.s32.totalorder %v61, 1
    %v63 = vsel %vm62, 1, 0
    %vm64 = vcmask 0
    %65 = vst.msk [vmem:[#allocation5] sm:$0x1] %vm64, %v63
    // Predicated region
    $region10: #{tpu_custom_call.1} parent=1 // pred_check
      _
    $region11: #{tpu_custom_call.1} parent=1 // pred_check_branch
      %67 = sbr.rel (0) target = $region13
    $region12: #{tpu_custom_call.1} parent=1 // pred_region
      %69 = vsyncadd [#allocation4], 0
      %s71 = sshll.u32 [#allocation5], 4
      %s72 = int_to_ptr.vmem [resolvable:$true] %s71
      %s73 = sshll.u32 %s1, 4
      %s74 = int_to_ptr.hbm [resolvable:$true] %s73
      %76 = dma.vmem_to_hbm [thread:$0]  %s72, 16, %s74, [#allocation4]
    $region13: #{tpu_custom_call.1} parent=1 // pred_fallthru
      _
    // Predicated region
    $region14: #{tpu_custom_call.1} parent=1 // pred_check
      _
    $region15: #{tpu_custom_call.1} parent=1 // pred_check_branch
      %78 = sbr.rel (0) target = $region17
    $region16: #{tpu_custom_call.1} parent=1 // pred_region
      %80 = dma.done [#allocation4], 16
    $region17: #{tpu_custom_call.1} parent=1 // pred_fallthru
      _
    %81 = vsyncpa [#allocation3], 1
    %82 = vsyncpa [#allocation4], 1

</llo_original>
